<compile_context>
chip_gen: v7x
topology: tpu7x:2x2x1
jax: 0.10.0
libtpu: 0.0.40
codegen_flags: <defaults>
</compile_context>

<pallas_src>
import jax
import jax.numpy as jnp
from jax import lax
from jax.experimental import pallas as pl
from jax.experimental.pallas import tpu as pltpu


def _embeddings_kernel(x_ref, w_ref, pos_ref, out_ref):
    """Single grid step; whole problem resident in VMEM.

    x_ref:   (B, C, S)  backbone features, channels-first (free reshape of NCHW)
    w_ref:   (C, Hd)    1x1-conv weight stored (in, out)
    pos_ref: (S, Hd)    position embeddings (shared across batch)
    out_ref: (B, S, Hd) embeddings output
    """
    w = w_ref[...]
    pos = pos_ref[...]
    # Static unroll over the (tiny) batch: one transposed-LHS MXU matmul each,
    # (C, S)^T @ (C, Hd) -> (S, Hd).  No in-kernel relayout, no masked stores.
    for b in range(x_ref.shape[0]):
        y = lax.dot_general(
            x_ref[b], w,
            dimension_numbers=(((0,), (0,)), ((), ())),
            preferred_element_type=jnp.float32,
        )                                       # (S, Hd), fp32 accumulation
        out_ref[b] = (y + pos).astype(out_ref.dtype)


def embeddings_pallas(last_feat, w_patch, pos_emb):
    """last_feat: (B, C, Hf, Wf) backbone output.
       w_patch:   (C, hidden)   (== PyTorch conv weight (hidden, C, 1, 1) transposed)
       pos_emb:   (1, S, hidden) with S = Hf * Wf.
       Returns (B, S, hidden)."""
    B, C, Hf, Wf = last_feat.shape
    S = Hf * Wf
    Hd = w_patch.shape[1]

    # Free reshape only (no HBM transpose): (B, C, Hf, Wf) -> (B, C, S).
    x = last_feat.reshape(B, C, S)
    pos2d = pos_emb.reshape(S, Hd)

    bytes_accessed = 4 * (B * C * S + C * Hd + S * Hd + B * S * Hd)

    return pl.pallas_call(
        _embeddings_kernel,
        out_shape=jax.ShapeDtypeStruct((B, S, Hd), last_feat.dtype),
        grid_spec=pltpu.PrefetchScalarGridSpec(
            num_scalar_prefetch=0,
            grid=(1,),                                          # single step
            in_specs=[
                pl.BlockSpec((B, C, S), lambda i: (0, 0, 0)),   # whole feature map
                pl.BlockSpec((C, Hd), lambda i: (0, 0)),        # shared weight
                pl.BlockSpec((S, Hd), lambda i: (0, 0)),        # shared pos emb
            ],
            out_specs=pl.BlockSpec((B, S, Hd), lambda i: (0, 0, 0)),
        ),
        compiler_params=pltpu.CompilerParams(
            dimension_semantics=("arbitrary",),
        ),
        cost_estimate=pl.CostEstimate(
            flops=2 * B * S * C * Hd,
            transcendentals=0,
            bytes_accessed=bytes_accessed,
        ),
    )(x, w_patch, pos2d)


def embeddings_forward(features, w_patch, pos_emb):
    """Mirrors Embeddings.forward: embeds the last backbone feature map with the
    Pallas kernel and returns (embeddings, features) unchanged."""
    last = features[-1]
    x = embeddings_pallas(last, w_patch, pos_emb)
    return x, features


def embeddings_ref(last_feat, w_patch, pos_emb):
    """Pure-JAX reference reproducing the PyTorch forward exactly
    (Conv2d 1x1 no bias -> flatten(2).transpose(1,2) -> + pos_emb -> dropout=id)."""
    B, C, Hf, Wf = last_feat.shape
    y = jnp.einsum("bchw,cd->bdhw", last_feat, w_patch)   # 1x1 conv, bias=False
    y = y.reshape(B, -1, Hf * Wf).transpose(0, 2, 1)      # flatten(2).transpose(1,2)
    return y + pos_emb


if __name__ == "__main__":
    # Small shapes consistent with the module:
    #   img_size = 256 -> feat_size = img_size // 32 = 8 -> num_patches S = 64
    #   backbone last_ch C = 128, hidden_size = 128 (lane-dense), batch B = 2
    B, C, Hf, Wf = 2, 128, 8, 8
    S = Hf * Wf
    HIDDEN = 128

    key = jax.random.PRNGKey(0)
    k_feat, k_w, k_pos = jax.random.split(key, 3)

    # Stand-in for backbone(x)[-1]; the real backbone is untranslatable (timm CNN).
    last_feat = jax.random.normal(k_feat, (B, C, Hf, Wf), dtype=jnp.float32)
    features = [last_feat]

    # Patch-embedding weight in (in, out) convention (PyTorch stores (out, in, 1, 1)).
    w_patch = jax.random.normal(k_w, (C, HIDDEN), dtype=jnp.float32) * 0.05
    # Position embeddings are zero-initialized in the module; use random values
    # (as if trained) so the addition is actually exercised by the check.
    pos_emb = jax.random.normal(k_pos, (1, S, HIDDEN), dtype=jnp.float32) * 0.05

    out, feats_out = embeddings_forward(features, w_patch, pos_emb)
    jax.block_until_ready(out)

    out_ref = embeddings_ref(last_feat, w_patch, pos_emb)
    assert out.shape == (B, S, HIDDEN), f"bad output shape {out.shape}"
    assert jnp.allclose(out, out_ref, atol=1e-5, rtol=1e-5), "embeddings mismatch"
    assert feats_out[-1] is last_feat, "features must be passed through unchanged"

    print("KERNEL_OK")
</pallas_src>

<mosaic_0001>
module attributes {stable_mosaic.version = 11 : i64} {
  func.func @_embeddings_kernel(%arg0: i32, %arg1: memref<2x128x64xf32, #tpu.memory_space<vmem>>, %arg2: memref<128x128xf32, #tpu.memory_space<vmem>>, %arg3: memref<64x128xf32, #tpu.memory_space<vmem>>, %arg4: memref<2x64x128xf32, #tpu.memory_space<vmem>>) attributes {dimension_semantics = [#tpu.dimension_semantics<arbitrary>], iteration_bounds = array<i64: 1>, scalar_prefetch = 0 : i64, scratch_operands = 0 : i64, tpu.core_type = #tpu.core_type<tc>, window_params = [{pipeline_mode = #tpu.pipeline_mode<synchronous>, transform_indices = @transform_0, window_bounds = array<i64: 2, 128, 64>}, {pipeline_mode = #tpu.pipeline_mode<synchronous>, transform_indices = @transform_1, window_bounds = array<i64: 128, 128>}, {pipeline_mode = #tpu.pipeline_mode<synchronous>, transform_indices = @transform_2, window_bounds = array<i64: 64, 128>}, {pipeline_mode = #tpu.pipeline_mode<synchronous>, transform_indices = @transform_3, window_bounds = array<i64: 2, 64, 128>}]} {
    %c0 = arith.constant 0 : index
    %c0_0 = arith.constant 0 : index
    %0 = vector.load %arg2[%c0, %c0_0] : memref<128x128xf32, #tpu.memory_space<vmem>>, vector<128x128xf32>
    %c0_1 = arith.constant 0 : index
    %c0_2 = arith.constant 0 : index
    %1 = vector.load %arg3[%c0_1, %c0_2] : memref<64x128xf32, #tpu.memory_space<vmem>>, vector<64x128xf32>
    %c0_3 = arith.constant 0 : index
    %c0_4 = arith.constant 0 : index
    %c0_5 = arith.constant 0 : index
    %2 = vector.load %arg1[%c0_3, %c0_4, %c0_5] : memref<2x128x64xf32, #tpu.memory_space<vmem>>, vector<1x128x64xf32>
    %3 = vector.shape_cast %2 : vector<1x128x64xf32> to vector<128x64xf32>
    %cst = arith.constant dense<0.000000e+00> : vector<64x128xf32>
    %4 = tpu.matmul %3, %0, %cst {dimension_numbers = #tpu.dot_dimension_numbers<[0], [0], [1], [1], [0, 1, 1, 1], [], []>} : vector<128x64xf32>, vector<128x128xf32>, vector<64x128xf32> -> vector<64x128xf32>
    %5 = arith.addf %4, %1 : vector<64x128xf32>
    %c0_6 = arith.constant 0 : index
    %c0_7 = arith.constant 0 : index
    %c0_8 = arith.constant 0 : index
    %6 = vector.load %arg4[%c0_6, %c0_7, %c0_8] : memref<2x64x128xf32, #tpu.memory_space<vmem>>, vector<1x64x128xf32>
    %7 = vector.shape_cast %6 : vector<1x64x128xf32> to vector<64x128xf32>
    %8 = vector.shape_cast %5 : vector<64x128xf32> to vector<1x64x128xf32>
    tpu.vector_store %arg4[%c0_6, %c0_7, %c0_8], %8 {strides = array<i32>} : memref<2x64x128xf32, #tpu.memory_space<vmem>>, vector<1x64x128xf32>,
    %c1 = arith.constant 1 : index
    %c0_9 = arith.constant 0 : index
    %c0_10 = arith.constant 0 : index
    %9 = vector.load %arg1[%c1, %c0_9, %c0_10] : memref<2x128x64xf32, #tpu.memory_space<vmem>>, vector<1x128x64xf32>
    %10 = vector.shape_cast %9 : vector<1x128x64xf32> to vector<128x64xf32>
    %cst_11 = arith.constant dense<0.000000e+00> : vector<64x128xf32>
    %11 = tpu.matmul %10, %0, %cst_11 {dimension_numbers = #tpu.dot_dimension_numbers<[0], [0], [1], [1], [0, 1, 1, 1], [], []>} : vector<128x64xf32>, vector<128x128xf32>, vector<64x128xf32> -> vector<64x128xf32>
    %12 = arith.addf %11, %1 : vector<64x128xf32>
    %c1_12 = arith.constant 1 : index
    %c0_13 = arith.constant 0 : index
    %c0_14 = arith.constant 0 : index
    %13 = vector.load %arg4[%c1_12, %c0_13, %c0_14] : memref<2x64x128xf32, #tpu.memory_space<vmem>>, vector<1x64x128xf32>
    %14 = vector.shape_cast %13 : vector<1x64x128xf32> to vector<64x128xf32>
    %15 = vector.shape_cast %12 : vector<64x128xf32> to vector<1x64x128xf32>
    tpu.vector_store %arg4[%c1_12, %c0_13, %c0_14], %15 {strides = array<i32>} : memref<2x64x128xf32, #tpu.memory_space<vmem>>, vector<1x64x128xf32>,
    return
  }
  func.func @transform_0(%arg0: i32) -> (i32, i32, i32) {
    %c0_i32 = arith.constant 0 : i32
    %c0_i32_0 = arith.constant 0 : i32
    %c0_i32_1 = arith.constant 0 : i32
    %c0_i32_2 = arith.constant 0 : i32
    return %c0_i32, %c0_i32_0, %c0_i32_1 : i32, i32, i32
  }
  func.func @transform_1(%arg0: i32) -> (i32, i32) {
    %c0_i32 = arith.constant 0 : i32
    %c0_i32_0 = arith.constant 0 : i32
    %c0_i32_1 = arith.constant 0 : i32
    return %c0_i32, %c0_i32_0 : i32, i32
  }
  func.func @transform_2(%arg0: i32) -> (i32, i32) {
    %c0_i32 = arith.constant 0 : i32
    %c0_i32_0 = arith.constant 0 : i32
    %c0_i32_1 = arith.constant 0 : i32
    return %c0_i32, %c0_i32_0 : i32, i32
  }
  func.func @transform_3(%arg0: i32) -> (i32, i32, i32) {
    %c0_i32 = arith.constant 0 : i32
    %c0_i32_0 = arith.constant 0 : i32
    %c0_i32_1 = arith.constant 0 : i32
    %c0_i32_2 = arith.constant 0 : i32
    return %c0_i32, %c0_i32_0, %c0_i32_1 : i32, i32, i32
  }
}

</mosaic_0001>

<llo_original>
// kernel: tpu_custom_call.1
$region0: #{tpu_custom_call.1}
  #allocation0 [shape = 'u32[]', space=smem, size = 0x4, offset = 0x4, fixed_abs, tag = 'smem constant byte address 0x4 - core index']
  #allocation1 [shape = 'u32[144,128]{1,0:T(1,128)}', space=vmem, size = 0x12000, scoped, tag = 'internal scratch']
  %s0 = inlined_call_operand.vmem [shape: f32[2,128,64], index: 0, kind: input, shape index: {}]
  %s1 = inlined_call_operand.vmem [shape: f32[128,128], index: 1, kind: input, shape index: {}]
  %s2 = inlined_call_operand.vmem [shape: f32[64,128], index: 2, kind: input, shape index: {}]
  %s3 = inlined_call_operand.hbm [shape: f32[2,64,128], index: 3, kind: output, shape index: {}]
  %s4 = sld [smem:[#allocation0]]
  $region22: #{tpu_custom_call.1} parent=0
    _
  %s6 = ssub.s32 1, %s4
  %s7 = scalar_select 0, %s6, %s4
  $region1: #{tpu_custom_call.1} parent=0
    #allocation2 [shape = 'u8[65536]{0}', space=vmem, size = 0x10000, scoped, tag = 'output window, operand 0, single buffered']
    #allocation3 [shape = 's32[1]{0}', space=sflag, size = 0x4, scoped, tag = 'scoped memory for tpu_custom_call.1']
    %8 = vsyncpa [#allocation3], 0
    // Predicated region
    $region2: #{tpu_custom_call.1} parent=1 // pred_check
      _
    $region3: #{tpu_custom_call.1} parent=1 // pred_check_branch
      %10 = sbr.rel (0) target = $region5
    $region4: #{tpu_custom_call.1} parent=1 // pred_region
      _
    $region5: #{tpu_custom_call.1} parent=1 // pred_fallthru
      _
    // Predicated region
    $region6: #{tpu_custom_call.1} parent=1 // pred_check
      _
    $region7: #{tpu_custom_call.1} parent=1 // pred_check_branch
      %12 = sbr.rel (0) target = $region9
    $region8: #{tpu_custom_call.1} parent=1 // pred_region
      _
    $region9: #{tpu_custom_call.1} parent=1 // pred_fallthru
      _
    // Predicated region
    $region10: #{tpu_custom_call.1} parent=1 // pred_check
      _
    $region11: #{tpu_custom_call.1} parent=1 // pred_check_branch
      %14 = sbr.rel (0) target = $region13
    $region12: #{tpu_custom_call.1} parent=1 // pred_region
      _
    $region13: #{tpu_custom_call.1} parent=1 // pred_fallthru
      _
    %v15 = vld [vmem:[%s1] sm:$0xff]
    %v16 = vld [vmem:[%s1 + $0x8] sm:$0xff]
    %v17 = vld [vmem:[%s1 + $0x10] sm:$0xff]
    %v18 = vld [vmem:[%s1 + $0x18] sm:$0xff]
    %v19 = vld [vmem:[%s1 + $0x20] sm:$0xff]
    %v20 = vld [vmem:[%s1 + $0x28] sm:$0xff]
    %v21 = vld [vmem:[%s1 + $0x30] sm:$0xff]
    %v22 = vld [vmem:[%s1 + $0x38] sm:$0xff]
    %v23 = vld [vmem:[%s1 + $0x40] sm:$0xff]
    %v24 = vld [vmem:[%s1 + $0x48] sm:$0xff]
    %v25 = vld [vmem:[%s1 + $0x50] sm:$0xff]
    %v26 = vld [vmem:[%s1 + $0x58] sm:$0xff]
    %v27 = vld [vmem:[%s1 + $0x60] sm:$0xff]
    %v28 = vld [vmem:[%s1 + $0x68] sm:$0xff]
    %v29 = vld [vmem:[%s1 + $0x70] sm:$0xff]
    %v30 = vld [vmem:[%s1 + $0x78] sm:$0xff]
    %v31 = vld [vmem:[%s2] sm:$0xff]
    %v32 = vld [vmem:[%s2 + $0x8] sm:$0xff]
    %v33 = vld [vmem:[%s2 + $0x10] sm:$0xff]
    %v34 = vld [vmem:[%s2 + $0x18] sm:$0xff]
    %v35 = vld [vmem:[%s2 + $0x20] sm:$0xff]
    %v36 = vld [vmem:[%s2 + $0x28] sm:$0xff]
    %v37 = vld [vmem:[%s2 + $0x30] sm:$0xff]
    %v38 = vld [vmem:[%s2 + $0x38] sm:$0xff]
    %v39 = vld [vmem:[%s0] sm:$0xff]
    %v40 = vld [vmem:[%s0 + $0x8] sm:$0xff]
    %v41 = vld [vmem:[%s0 + $0x10] sm:$0xff]
    %v42 = vld [vmem:[%s0 + $0x18] sm:$0xff]
    %v43 = vld [vmem:[%s0 + $0x20] sm:$0xff]
    %v44 = vld [vmem:[%s0 + $0x28] sm:$0xff]
    %v45 = vld [vmem:[%s0 + $0x30] sm:$0xff]
    %v46 = vld [vmem:[%s0 + $0x38] sm:$0xff]
    %v47 = vld [vmem:[%s0 + $0x40] sm:$0xff]
    %v48 = vld [vmem:[%s0 + $0x48] sm:$0xff]
    %v49 = vld [vmem:[%s0 + $0x50] sm:$0xff]
    %v50 = vld [vmem:[%s0 + $0x58] sm:$0xff]
    %v51 = vld [vmem:[%s0 + $0x60] sm:$0xff]
    %v52 = vld [vmem:[%s0 + $0x68] sm:$0xff]
    %v53 = vld [vmem:[%s0 + $0x70] sm:$0xff]
    %v54 = vld [vmem:[%s0 + $0x78] sm:$0xff]
    %55 = vxpose.xlu0.b32.start [1/16] %v39, 128
    %56 = vxpose.xlu0.b32.cont [2/16] %v40, 128
    %57 = vxpose.xlu0.b32.cont [3/16] %v41, 128
    %58 = vxpose.xlu0.b32.cont [4/16] %v42, 128
    %59 = vxpose.xlu0.b32.cont [5/16] %v43, 128
    %60 = vxpose.xlu0.b32.cont [6/16] %v44, 128
    %61 = vxpose.xlu0.b32.cont [7/16] %v45, 128
    %62 = vxpose.xlu0.b32.cont [8/16] %v46, 128
    %63 = vxpose.xlu0.b32.cont [9/16] %v47, 128
    %64 = vxpose.xlu0.b32.cont [10/16] %v48, 128
    %65 = vxpose.xlu0.b32.cont [11/16] %v49, 128
    %66 = vxpose.xlu0.b32.cont [12/16] %v50, 128
    %67 = vxpose.xlu0.b32.cont [13/16] %v51, 128
    %68 = vxpose.xlu0.b32.cont [14/16] %v52, 128
    %69 = vxpose.xlu0.b32.cont [15/16] %v53, 128
    %70 = vxpose.xlu0.b32.end [16/16] %v54, 128
    %v71 = vpop.trf.xlu0
    %v72 = vpop.trf.xlu0
    %v73 = vpop.trf.xlu0
    %v74 = vpop.trf.xlu0
    %v75 = vpop.trf.xlu0
    %v76 = vpop.trf.xlu0
    %v77 = vpop.trf.xlu0
    %v78 = vpop.trf.xlu0
    %v79 = vpop.trf.xlu0
    %v80 = vpop.trf.xlu0
    %v81 = vpop.trf.xlu0
    %v82 = vpop.trf.xlu0
    %v83 = vpop.trf.xlu0
    %v84 = vpop.trf.xlu0
    %v85 = vpop.trf.xlu0
    %v86 = vpop.trf.xlu0
    %87 = vmatprep.subr.mxu0 0.0
    %88 = vmatpush1.msra.mxu0 %v15
    %89 = vmatprep.subr.mxu0 0.0
    %90 = vmatpush1.msra.mxu0 %v16
    %91 = vmatprep.subr.mxu0 0.0
    %92 = vmatpush1.msra.mxu0 %v17
    %93 = vmatprep.subr.mxu0 0.0
    %94 = vmatpush1.msra.mxu0 %v18
    %95 = vmatprep.subr.mxu0 0.0
    %96 = vmatpush1.msra.mxu0 %v19
    %97 = vmatprep.subr.mxu0 0.0
    %98 = vmatpush1.msra.mxu0 %v20
    %99 = vmatprep.subr.mxu0 0.0
    %100 = vmatpush1.msra.mxu0 %v21
    %101 = vmatprep.subr.mxu0 0.0
    %102 = vmatpush1.msra.mxu0 %v22
    %103 = vmatprep.subr.mxu0 0.0
    %104 = vmatpush1.msra.mxu0 %v23
    %105 = vmatprep.subr.mxu0 0.0
    %106 = vmatpush1.msra.mxu0 %v24
    %107 = vmatprep.subr.mxu0 0.0
    %108 = vmatpush1.msra.mxu0 %v25
    %109 = vmatprep.subr.mxu0 0.0
    %110 = vmatpush1.msra.mxu0 %v26
    %111 = vmatprep.subr.mxu0 0.0
    %112 = vmatpush1.msra.mxu0 %v27
    %113 = vmatprep.subr.mxu0 0.0
    %114 = vmatpush1.msra.mxu0 %v28
    %115 = vmatprep.subr.mxu0 0.0
    %116 = vmatpush1.msra.mxu0 %v29
    %117 = vmatprep.subr.mxu0 0.0
    %118 = vmatpush1.msra.mxu0 %v30
    %119 = vmatprep.subr.mxu0 0.0
    %120 = vmatpush1.msra.mxu0 0.0
    %121 = vmatprep.subr.mxu0 0.0
    %122 = vmatpush1.msra.mxu0 0.0
    %123 = vmatprep.subr.mxu0 0.0
    %124 = vmatpush1.msra.mxu0 0.0
    %125 = vmatprep.subr.mxu0 0.0
    %126 = vmatpush1.msra.mxu0 0.0
    %127 = vmatprep.subr.mxu0 0.0
    %128 = vmatpush1.msra.mxu0 0.0
    %129 = vmatprep.subr.mxu0 0.0
    %130 = vmatpush1.msra.mxu0 0.0
    %131 = vmatprep.subr.mxu0 0.0
    %132 = vmatpush1.msra.mxu0 0.0
    %133 = vmatprep.subr.mxu0 0.0
    %134 = vmatpush1.msra.mxu0 0.0
    %135 = vmatprep.subr.mxu0 0.0
    %136 = vmatpush1.msra.mxu0 0.0
    %137 = vmatprep.subr.mxu0 0.0
    %138 = vmatpush1.msra.mxu0 0.0
    %139 = vmatprep.subr.mxu0 0.0
    %140 = vmatpush1.msra.mxu0 0.0
    %141 = vmatprep.subr.mxu0 0.0
    %142 = vmatpush1.msra.mxu0 0.0
    %143 = vmatprep.subr.mxu0 0.0
    %144 = vmatpush1.msra.mxu0 0.0
    %145 = vmatprep.subr.mxu0 0.0
    %146 = vmatpush1.msra.mxu0 0.0
    %147 = vmatprep.subr.mxu0 0.0
    %148 = vmatpush1.msra.mxu0 0.0
    %149 = vmatprep.subr.mxu0 0.0
    %150 = vmatpush1.msra.mxu0 0.0
    %151 = vmatprep.mubr.f32.mxu0 0.0
    %152 = vmatmul.mubr.f32.gmra.mrb[0].mxu0 %v71
    %v153 = vpop.f32.mrb[0].mxu0
    %v154 = vadd.f32 %v31, %v153
    %v155 = vpop.f32.mrb[0].mxu0
    %156 = vmatprep.mubr.f32.mxu0 0.0
    %157 = vmatmul.mubr.f32.gmra.mrb[0].mxu0 %v72
    %v158 = vpop.f32.mrb[0].mxu0
    %v159 = vadd.f32 %v32, %v158
    %v160 = vpop.f32.mrb[0].mxu0
    %161 = vmatprep.mubr.f32.mxu0 0.0
    %162 = vmatmul.mubr.f32.gmra.mrb[0].mxu0 %v73
    %v163 = vpop.f32.mrb[0].mxu0
    %v164 = vadd.f32 %v33, %v163
    %v165 = vpop.f32.mrb[0].mxu0
    %166 = vmatprep.mubr.f32.mxu0 0.0
    %167 = vmatmul.mubr.f32.gmra.mrb[0].mxu0 %v74
    %v168 = vpop.f32.mrb[0].mxu0
    %v169 = vadd.f32 %v34, %v168
    %v170 = vpop.f32.mrb[0].mxu0
    %171 = vmatprep.mubr.f32.mxu0 0.0
    %172 = vmatmul.mubr.f32.gmra.mrb[0].mxu0 %v75
    %v173 = vpop.f32.mrb[0].mxu0
    %v174 = vadd.f32 %v35, %v173
    %v175 = vpop.f32.mrb[0].mxu0
    %176 = vmatprep.mubr.f32.mxu0 0.0
    %177 = vmatmul.mubr.f32.gmra.mrb[0].mxu0 %v76
    %v178 = vpop.f32.mrb[0].mxu0
    %v179 = vadd.f32 %v36, %v178
    %v180 = vpop.f32.mrb[0].mxu0
    %181 = vmatprep.mubr.f32.mxu0 0.0
    %182 = vmatmul.mubr.f32.gmra.mrb[0].mxu0 %v77
    %v183 = vpop.f32.mrb[0].mxu0
    %v184 = vadd.f32 %v37, %v183
    %v185 = vpop.f32.mrb[0].mxu0
    %186 = vmatprep.mubr.f32.mxu0 0.0
    %187 = vmatmul.mubr.f32.gmra.mrb[0].mxu0 %v78
    %v188 = vpop.f32.mrb[0].mxu0
    %v189 = vadd.f32 %v38, %v188
    %v190 = vpop.f32.mrb[0].mxu0
    %191 = vdwg.mxu0
    %192 = vst [vmem:[#allocation2] sm:$0xff] %v154
    %193 = vst [vmem:[#allocation2 + $0x8] sm:$0xff] %v159
    %194 = vst [vmem:[#allocation2 + $0x10] sm:$0xff] %v164
    %195 = vst [vmem:[#allocation2 + $0x18] sm:$0xff] %v169
    %196 = vst [vmem:[#allocation2 + $0x20] sm:$0xff] %v174
    %197 = vst [vmem:[#allocation2 + $0x28] sm:$0xff] %v179
    %198 = vst [vmem:[#allocation2 + $0x30] sm:$0xff] %v184
    %199 = vst [vmem:[#allocation2 + $0x38] sm:$0xff] %v189
    %s200 = scalar_lea.vmem %s0, 128
    %v201 = vld [vmem:[%s200] sm:$0xff]
    %v202 = vld [vmem:[%s200 + $0x8] sm:$0xff]
    %v203 = vld [vmem:[%s200 + $0x10] sm:$0xff]
    %v204 = vld [vmem:[%s200 + $0x18] sm:$0xff]
    %v205 = vld [vmem:[%s200 + $0x20] sm:$0xff]
    %v206 = vld [vmem:[%s200 + $0x28] sm:$0xff]
    %v207 = vld [vmem:[%s200 + $0x30] sm:$0xff]
    %v208 = vld [vmem:[%s200 + $0x38] sm:$0xff]
    %v209 = vld [vmem:[%s200 + $0x40] sm:$0xff]
    %v210 = vld [vmem:[%s200 + $0x48] sm:$0xff]
    %v211 = vld [vmem:[%s200 + $0x50] sm:$0xff]
    %v212 = vld [vmem:[%s200 + $0x58] sm:$0xff]
    %v213 = vld [vmem:[%s200 + $0x60] sm:$0xff]
    %v214 = vld [vmem:[%s200 + $0x68] sm:$0xff]
    %v215 = vld [vmem:[%s200 + $0x70] sm:$0xff]
    %v216 = vld [vmem:[%s200 + $0x78] sm:$0xff]
    %217 = vxpose.xlu0.b32.start [1/16] %v201, 128
    %218 = vxpose.xlu0.b32.cont [2/16] %v202, 128
    %219 = vxpose.xlu0.b32.cont [3/16] %v203, 128
    %220 = vxpose.xlu0.b32.cont [4/16] %v204, 128
    %221 = vxpose.xlu0.b32.cont [5/16] %v205, 128
    %222 = vxpose.xlu0.b32.cont [6/16] %v206, 128
    %223 = vxpose.xlu0.b32.cont [7/16] %v207, 128
    %224 = vxpose.xlu0.b32.cont [8/16] %v208, 128
    %225 = vxpose.xlu0.b32.cont [9/16] %v209, 128
    %226 = vxpose.xlu0.b32.cont [10/16] %v210, 128
    %227 = vxpose.xlu0.b32.cont [11/16] %v211, 128
    %228 = vxpose.xlu0.b32.cont [12/16] %v212, 128
    %229 = vxpose.xlu0.b32.cont [13/16] %v213, 128
    %230 = vxpose.xlu0.b32.cont [14/16] %v214, 128
    %231 = vxpose.xlu0.b32.cont [15/16] %v215, 128
    %232 = vxpose.xlu0.b32.end [16/16] %v216, 128
    %v233 = vpop.trf.xlu0
    %v234 = vpop.trf.xlu0
    %v235 = vpop.trf.xlu0
    %v236 = vpop.trf.xlu0
    %v237 = vpop.trf.xlu0
    %v238 = vpop.trf.xlu0
    %v239 = vpop.trf.xlu0
    %v240 = vpop.trf.xlu0
    %v241 = vpop.trf.xlu0
    %v242 = vpop.trf.xlu0
    %v243 = vpop.trf.xlu0
    %v244 = vpop.trf.xlu0
    %v245 = vpop.trf.xlu0
    %v246 = vpop.trf.xlu0
    %v247 = vpop.trf.xlu0
    %v248 = vpop.trf.xlu0
    %249 = vmatprep.subr.mxu0 0.0
    %250 = vmatpush1.msra.mxu0 %v15
    %251 = vmatprep.subr.mxu0 0.0
    %252 = vmatpush1.msra.mxu0 %v16
    %253 = vmatprep.subr.mxu0 0.0
    %254 = vmatpush1.msra.mxu0 %v17
    %255 = vmatprep.subr.mxu0 0.0
    %256 = vmatpush1.msra.mxu0 %v18
    %257 = vmatprep.subr.mxu0 0.0
    %258 = vmatpush1.msra.mxu0 %v19
    %259 = vmatprep.subr.mxu0 0.0
    %260 = vmatpush1.msra.mxu0 %v20
    %261 = vmatprep.subr.mxu0 0.0
    %262 = vmatpush1.msra.mxu0 %v21
    %263 = vmatprep.subr.mxu0 0.0
    %264 = vmatpush1.msra.mxu0 %v22
    %265 = vmatprep.subr.mxu0 0.0
    %266 = vmatpush1.msra.mxu0 %v23
    %267 = vmatprep.subr.mxu0 0.0
    %268 = vmatpush1.msra.mxu0 %v24
    %269 = vmatprep.subr.mxu0 0.0
    %270 = vmatpush1.msra.mxu0 %v25
    %271 = vmatprep.subr.mxu0 0.0
    %272 = vmatpush1.msra.mxu0 %v26
    %273 = vmatprep.subr.mxu0 0.0
    %274 = vmatpush1.msra.mxu0 %v27
    %275 = vmatprep.subr.mxu0 0.0
    %276 = vmatpush1.msra.mxu0 %v28
    %277 = vmatprep.subr.mxu0 0.0
    %278 = vmatpush1.msra.mxu0 %v29
    %279 = vmatprep.subr.mxu0 0.0
    %280 = vmatpush1.msra.mxu0 %v30
    %281 = vmatprep.subr.mxu0 0.0
    %282 = vmatpush1.msra.mxu0 0.0
    %283 = vmatprep.subr.mxu0 0.0
    %284 = vmatpush1.msra.mxu0 0.0
    %285 = vmatprep.subr.mxu0 0.0
    %286 = vmatpush1.msra.mxu0 0.0
    %287 = vmatprep.subr.mxu0 0.0
    %288 = vmatpush1.msra.mxu0 0.0
    %289 = vmatprep.subr.mxu0 0.0
    %290 = vmatpush1.msra.mxu0 0.0
    %291 = vmatprep.subr.mxu0 0.0
    %292 = vmatpush1.msra.mxu0 0.0
    %293 = vmatprep.subr.mxu0 0.0
    %294 = vmatpush1.msra.mxu0 0.0
    %295 = vmatprep.subr.mxu0 0.0
    %296 = vmatpush1.msra.mxu0 0.0
    %297 = vmatprep.subr.mxu0 0.0
    %298 = vmatpush1.msra.mxu0 0.0
    %299 = vmatprep.subr.mxu0 0.0
    %300 = vmatpush1.msra.mxu0 0.0
    %301 = vmatprep.subr.mxu0 0.0
    %302 = vmatpush1.msra.mxu0 0.0
    %303 = vmatprep.subr.mxu0 0.0
    %304 = vmatpush1.msra.mxu0 0.0
    %305 = vmatprep.subr.mxu0 0.0
    %306 = vmatpush1.msra.mxu0 0.0
    %307 = vmatprep.subr.mxu0 0.0
    %308 = vmatpush1.msra.mxu0 0.0
    %309 = vmatprep.subr.mxu0 0.0
    %310 = vmatpush1.msra.mxu0 0.0
    %311 = vmatprep.subr.mxu0 0.0
    %312 = vmatpush1.msra.mxu0 0.0
    %313 = vmatprep.mubr.f32.mxu0 0.0
    %314 = vmatmul.mubr.f32.gmra.mrb[0].mxu0 %v233
    %v315 = vpop.f32.mrb[0].mxu0
    %v316 = vadd.f32 %v31, %v315
    %v317 = vpop.f32.mrb[0].mxu0
    %318 = vmatprep.mubr.f32.mxu0 0.0
    %319 = vmatmul.mubr.f32.gmra.mrb[0].mxu0 %v234
    %v320 = vpop.f32.mrb[0].mxu0
    %v321 = vadd.f32 %v32, %v320
    %v322 = vpop.f32.mrb[0].mxu0
    %323 = vmatprep.mubr.f32.mxu0 0.0
    %324 = vmatmul.mubr.f32.gmra.mrb[0].mxu0 %v235
    %v325 = vpop.f32.mrb[0].mxu0
    %v326 = vadd.f32 %v33, %v325
    %v327 = vpop.f32.mrb[0].mxu0
    %328 = vmatprep.mubr.f32.mxu0 0.0
    %329 = vmatmul.mubr.f32.gmra.mrb[0].mxu0 %v236
    %v330 = vpop.f32.mrb[0].mxu0
    %v331 = vadd.f32 %v34, %v330
    %v332 = vpop.f32.mrb[0].mxu0
    %333 = vmatprep.mubr.f32.mxu0 0.0
    %334 = vmatmul.mubr.f32.gmra.mrb[0].mxu0 %v237
    %v335 = vpop.f32.mrb[0].mxu0
    %v336 = vadd.f32 %v35, %v335
    %v337 = vpop.f32.mrb[0].mxu0
    %338 = vmatprep.mubr.f32.mxu0 0.0
    %339 = vmatmul.mubr.f32.gmra.mrb[0].mxu0 %v238
    %v340 = vpop.f32.mrb[0].mxu0
    %v341 = vadd.f32 %v36, %v340
    %v342 = vpop.f32.mrb[0].mxu0
    %343 = vmatprep.mubr.f32.mxu0 0.0
    %344 = vmatmul.mubr.f32.gmra.mrb[0].mxu0 %v239
    %v345 = vpop.f32.mrb[0].mxu0
    %v346 = vadd.f32 %v37, %v345
    %v347 = vpop.f32.mrb[0].mxu0
    %348 = vmatprep.mubr.f32.mxu0 0.0
    %349 = vmatmul.mubr.f32.gmra.mrb[0].mxu0 %v240
    %v350 = vpop.f32.mrb[0].mxu0
    %v351 = vadd.f32 %v38, %v350
    %v352 = vpop.f32.mrb[0].mxu0
    %353 = vdwg.mxu0
    %s354 = scalar_lea.vmem [#allocation2], 64
    %355 = vst [vmem:[%s354] sm:$0xff] %v316
    %356 = vst [vmem:[%s354 + $0x8] sm:$0xff] %v321
    %357 = vst [vmem:[%s354 + $0x10] sm:$0xff] %v326
    %358 = vst [vmem:[%s354 + $0x18] sm:$0xff] %v331
    %359 = vst [vmem:[%s354 + $0x20] sm:$0xff] %v336
    %360 = vst [vmem:[%s354 + $0x28] sm:$0xff] %v341
    %361 = vst [vmem:[%s354 + $0x30] sm:$0xff] %v346
    %362 = vst [vmem:[%s354 + $0x38] sm:$0xff] %v351
    // Predicated region
    $region14: #{tpu_custom_call.1} parent=1 // pred_check
      _
    $region15: #{tpu_custom_call.1} parent=1 // pred_check_branch
      %364 = sbr.rel (0) target = $region17
    $region16: #{tpu_custom_call.1} parent=1 // pred_region
      %s366 = ssub.s32 2048, 2048
      %367 = vsyncadd [#allocation3], %s366
      %s368 = sshll.u32 [#allocation2], 4
      %s369 = int_to_ptr.vmem [resolvable:$true] %s368
      %374 = dma.vmem_to_hbm [thread:$0]  %s369, 2048, %s3, [#allocation3], 128, 128, 8
    $region17: #{tpu_custom_call.1} parent=1 // pred_fallthru
      _
    // Predicated region
    $region18: #{tpu_custom_call.1} parent=1 // pred_check
      _
    $region19: #{tpu_custom_call.1} parent=1 // pred_check_branch
      %376 = sbr.rel (0) target = $region21
    $region20: #{tpu_custom_call.1} parent=1 // pred_region
      %377 = dma.done [#allocation3], 2048
    $region21: #{tpu_custom_call.1} parent=1 // pred_fallthru
      _
    %378 = vsyncpa [#allocation3], 1

</llo_original>
